<compile_context>
chip_gen: v7x
topology: tpu7x:2x2x1
jax: 0.10.0
libtpu: 0.0.40
codegen_flags: <defaults>
</compile_context>

<pallas_src>
import jax
import jax.numpy as jnp
from jax.experimental import pallas as pl
from jax.experimental.pallas import tpu as pltpu


def _round_up(x, m):
    return ((x + m - 1) // m) * m


# ---------------------------------------------------------------------------
# Kernels
# ---------------------------------------------------------------------------

def _fullk_kernel(x_ref, w_ref, b_ref, o_ref):
    # x_ref: (tm, K) f32 | w_ref: (K, tn) bf16 | b_ref: (1, tn) f32 | o_ref: (tm, tn) f32
    x = x_ref[...].astype(jnp.bfloat16)          # VPU cast; x DMAed once per i
    y = jnp.dot(x, w_ref[...], preferred_element_type=jnp.float32)
    o_ref[...] = jnp.tanh(y + b_ref[...]).astype(o_ref.dtype)


def _kred_kernel(x_ref, w_ref, b_ref, o_ref):
    # Fallback for very large K: accumulate directly into the f32 output tile.
    # x_ref: (tm, tk) bf16 | w_ref: (tk, tn) bf16 | b_ref: (1, tn) f32 | o_ref: (tm, tn) f32
    k = pl.program_id(2)

    @pl.when(k == 0)
    def _():
        o_ref[...] = jnp.zeros_like(o_ref)

    o_ref[...] += jnp.dot(x_ref[...], w_ref[...],
                          preferred_element_type=jnp.float32)

    @pl.when(k == pl.num_programs(2) - 1)
    def _():
        o_ref[...] = jnp.tanh(o_ref[...] + b_ref[...]).astype(o_ref.dtype)


# ---------------------------------------------------------------------------
# Planning helpers
# ---------------------------------------------------------------------------

def _vmem_budget_bytes():
    """~3/4 of physical VMEM (capped at 100 MiB); v7x-safe 48 MiB fallback."""
    cap = 64 << 20
    try:
        cap = int(getattr(pltpu.get_tpu_info(), "vmem_capacity_bytes", cap)) or cap
    except Exception:
        pass
    return int(min(cap * 3 // 4, 100 << 20))


def _plan(M, K, N, budget, *, force_tn=None, force_tk=None):
    """Pick pipeline mode + tiles.

    Preference: (1) full-K with the whole weight VMEM-resident (tn == Np),
    (2) full-K with tiled N, (3) K-reduction grid (huge K only).
    tm is kept >= 256 (or the M extent) to avoid underfilling the MXU.
    """
    Np128 = _round_up(N, 128)
    tm_cap = _round_up(M, 8)

    def clamp_tm(t):
        return min(t, tm_cap)

    def clamp_tn(t):
        return min(t, Np128)

    if force_tn is not None:
        tn_cands = [clamp_tn(_round_up(force_tn, 128))]
    else:
        tn_cands = []
        for t in (Np128, 1024, 512, 256):
            t = clamp_tn(t)
            if t not in tn_cands:
                tn_cands.append(t)

    if force_tk is None:
        for tn in tn_cands:
            for tm in (clamp_tm(512), clamp_tm(256)):
                # double-buffered f32 x strip + bf16 weight + f32 bias + f32 out
                fp = 2 * (tm * K * 4 + K * tn * 2 + tn * 4 + tm * tn * 4)
                if fp <= budget:
                    return dict(mode="fullk", tm=tm, tn=tn, tk=K, fp=fp)

    # K-reduction fallback (bf16 x in HBM to halve re-stream traffic).
    tm = clamp_tm(512)
    tn = tn_cands[0] if force_tn is not None else clamp_tn(512)
    if force_tk is not None:
        tk = max(128, _round_up(force_tk, 128))
    else:
        nk = pl.cdiv(K, 2048)
        tk = _round_up(pl.cdiv(K, nk), 128)
    fp = 2 * (tm * tk * 2 + tk * tn * 2 + tn * 4 + tm * tn * 4)
    return dict(mode="kred", tm=tm, tn=tn, tk=tk, fp=fp)


# ---------------------------------------------------------------------------
# Forward wrapper
# ---------------------------------------------------------------------------

def fcstl_forward(x, weight, bias, *, _force_tn=None, _force_tk=None):
    """tanh(x @ weight.T + bias), i.e. Dropout(p=0) -> Linear(K, N) -> Tanh.

    x: (..., K) f32 | weight: (N, K) (PyTorch nn.Linear layout) | bias: (N,)
    """
    *lead, K = x.shape
    N, K_w = weight.shape
    assert K_w == K, (K_w, K)
    M = 1
    for d in lead:
        M *= d

    budget = _vmem_budget_bytes()
    plan = _plan(M, K, N, budget, force_tn=_force_tn, force_tk=_force_tk)
    tm, tn, tk = plan["tm"], plan["tn"], plan["tk"]
    Np = _round_up(N, tn)

    x2 = x.reshape(M, K)
    # One-time (jit-amortized) transpose to (K, N): the kernel runs the
    # canonical (tm, tk) x (tk, tn) contraction — no per-tile XLU transpose.
    w = weight.T.astype(jnp.bfloat16)
    b = bias.astype(jnp.float32)
    if Np != N:
        w = jnp.pad(w, ((0, 0), (0, Np - N)))   # padded cols are zero -> sliced off
        b = jnp.pad(b, (0, Np - N))
    b2 = b.reshape(1, Np)

    vmem_limit = int(min(budget, max(32 << 20, (3 * plan["fp"]) // 2)))

    if plan["mode"] == "fullk":
        grid = (pl.cdiv(M, tm), Np // tn)
        out = pl.pallas_call(
            _fullk_kernel,
            out_shape=jax.ShapeDtypeStruct((M, Np), jnp.float32),
            grid_spec=pltpu.PrefetchScalarGridSpec(
                num_scalar_prefetch=0,
                grid=grid,
                in_specs=[
                    pl.BlockSpec((tm, K), lambda i, j: (i, 0)),   # x strip, full K
                    pl.BlockSpec((K, tn), lambda i, j: (0, j)),   # weight (K, N)
                    pl.BlockSpec((1, tn), lambda i, j: (0, j)),   # bias
                ],
                out_specs=pl.BlockSpec((tm, tn), lambda i, j: (i, j)),
            ),
            compiler_params=pltpu.CompilerParams(
                dimension_semantics=("parallel", "parallel"),
                vmem_limit_bytes=vmem_limit),
        )(x2, w, b2)
    else:
        Kp = _round_up(K, tk)
        xb = x2.astype(jnp.bfloat16)
        if Kp != K:
            # Zero K-padding keeps the reduction exact.
            xb = jnp.pad(xb, ((0, 0), (0, Kp - K)))
            w = jnp.pad(w, ((0, Kp - K), (0, 0)))
        grid = (pl.cdiv(M, tm), Np // tn, Kp // tk)
        out = pl.pallas_call(
            _kred_kernel,
            out_shape=jax.ShapeDtypeStruct((M, Np), jnp.float32),
            grid_spec=pltpu.PrefetchScalarGridSpec(
                num_scalar_prefetch=0,
                grid=grid,
                in_specs=[
                    pl.BlockSpec((tm, tk), lambda i, j, k: (i, k)),
                    pl.BlockSpec((tk, tn), lambda i, j, k: (k, j)),
                    pl.BlockSpec((1, tn), lambda i, j, k: (0, j)),
                ],
                out_specs=pl.BlockSpec((tm, tn), lambda i, j, k: (i, j)),
            ),
            compiler_params=pltpu.CompilerParams(
                dimension_semantics=("parallel", "parallel", "arbitrary"),
                vmem_limit_bytes=vmem_limit),
        )(xb, w, b2)

    if Np != N:
        out = out[:, :N]
    out = out.astype(x.dtype)
    return out.reshape(*lead, N)


if __name__ == "__main__":
    key = jax.random.PRNGKey(0)
    fwd = jax.jit(fcstl_forward, static_argnames=("_force_tn", "_force_tk"))

    def check(x, weight, bias, **kw):
        y = jax.block_until_ready(fwd(x, weight, bias, **kw))
        y_ref = jnp.tanh(x @ weight.T + bias)
        assert y.shape == y_ref.shape, (y.shape, y_ref.shape)
        err = float(jnp.max(jnp.abs(y - y_ref)))
        assert jnp.allclose(y, y_ref, atol=2.5e-2, rtol=2.5e-2), err

    # 1) Default path: full-K, fully VMEM-resident weight (dims = [32, 64]).
    k1, k2, k3, key = jax.random.split(key, 4)
    K, N = 32, 64
    x = jax.random.normal(k1, (2, 8, K), dtype=jnp.float32)
    w = jax.random.normal(k2, (N, K), dtype=jnp.float32) * 0.05
    b = jax.random.normal(k3, (N,), dtype=jnp.float32) * 0.1
    check(x, w, b)

    # 2) Full-K path with multiple N tiles + ragged M edge (masked stores).
    k1, k2, k3, key = jax.random.split(key, 4)
    K, N = 48, 256
    x = jax.random.normal(k1, (2, 5, K), dtype=jnp.float32)   # M = 10 (ragged)
    w = jax.random.normal(k2, (N, K), dtype=jnp.float32) * 0.05
    b = jax.random.normal(k3, (N,), dtype=jnp.float32) * 0.1
    check(x, w, b, _force_tn=128)

    # 3) K-reduction fallback path (forced small tk to exercise the 3-D grid).
    k1, k2, k3, key = jax.random.split(key, 4)
    K, N = 256, 64
    x = jax.random.normal(k1, (2, 8, K), dtype=jnp.float32)
    w = jax.random.normal(k2, (N, K), dtype=jnp.float32) * 0.05
    b = jax.random.normal(k3, (N,), dtype=jnp.float32) * 0.1
    check(x, w, b, _force_tk=128)

    print("KERNEL_OK")
</pallas_src>

<mosaic_0001>
module attributes {stable_mosaic.version = 11 : i64} {
  func.func @_fullk_kernel(%arg0: i32, %arg1: i32, %arg2: memref<16x32xf32, #tpu.memory_space<vmem>>, %arg3: memref<32x128xbf16, #tpu.memory_space<vmem>>, %arg4: memref<1x128xf32, #tpu.memory_space<vmem>>, %arg5: memref<16x128xf32, #tpu.memory_space<vmem>>) attributes {dimension_semantics = [#tpu.dimension_semantics<parallel>, #tpu.dimension_semantics<parallel>], iteration_bounds = array<i64: 1, 1>, scalar_prefetch = 0 : i64, scratch_operands = 0 : i64, tpu.core_type = #tpu.core_type<tc>, window_params = [{transform_indices = @transform_0, window_bounds = array<i64: 16, 32>}, {transform_indices = @transform_1, window_bounds = array<i64: 32, 128>}, {transform_indices = @transform_2, window_bounds = array<i64: 1, 128>}, {transform_indices = @transform_3, window_bounds = array<i64: 16, 128>}]} {
    %c0 = arith.constant 0 : index
    %c0_0 = arith.constant 0 : index
    %0 = vector.load %arg2[%c0, %c0_0] : memref<16x32xf32, #tpu.memory_space<vmem>>, vector<16x32xf32>
    %1 = arith.truncf %0 : vector<16x32xf32> to vector<16x32xbf16>
    %c0_1 = arith.constant 0 : index
    %c0_2 = arith.constant 0 : index
    %2 = vector.load %arg3[%c0_1, %c0_2] : memref<32x128xbf16, #tpu.memory_space<vmem>>, vector<32x128xbf16>
    %cst = arith.constant dense<0.000000e+00> : vector<16x128xf32>
    %3 = tpu.matmul %1, %2, %cst {dimension_numbers = #tpu.dot_dimension_numbers<[1], [0], [0], [1], [0, 0, 1, 1], [], []>} : vector<16x32xbf16>, vector<32x128xbf16>, vector<16x128xf32> -> vector<16x128xf32>
    %c0_3 = arith.constant 0 : index
    %c0_4 = arith.constant 0 : index
    %4 = vector.load %arg4[%c0_3, %c0_4] : memref<1x128xf32, #tpu.memory_space<vmem>>, vector<1x128xf32>
    %5 = vector.broadcast %4 : vector<1x128xf32> to vector<16x128xf32>
    %6 = arith.addf %3, %5 : vector<16x128xf32>
    %7 = math.tanh %6 : vector<16x128xf32>
    %c0_5 = arith.constant 0 : index
    %c0_6 = arith.constant 0 : index
    %8 = vector.load %arg5[%c0_5, %c0_6] : memref<16x128xf32, #tpu.memory_space<vmem>>, vector<16x128xf32>
    tpu.vector_store %arg5[%c0_5, %c0_6], %7 {strides = array<i32>} : memref<16x128xf32, #tpu.memory_space<vmem>>, vector<16x128xf32>,
    return
  }
  func.func @transform_0(%arg0: i32, %arg1: i32) -> (i32, i32) {
    %c0_i32 = arith.constant 0 : i32
    %c0_i32_0 = arith.constant 0 : i32
    return %arg0, %c0_i32 : i32, i32
  }
  func.func @transform_1(%arg0: i32, %arg1: i32) -> (i32, i32) {
    %c0_i32 = arith.constant 0 : i32
    %c0_i32_0 = arith.constant 0 : i32
    return %c0_i32, %arg1 : i32, i32
  }
  func.func @transform_2(%arg0: i32, %arg1: i32) -> (i32, i32) {
    %c0_i32 = arith.constant 0 : i32
    %c0_i32_0 = arith.constant 0 : i32
    return %c0_i32, %arg1 : i32, i32
  }
  func.func @transform_3(%arg0: i32, %arg1: i32) -> (i32, i32) {
    %c0_i32 = arith.constant 0 : i32
    return %arg0, %arg1 : i32, i32
  }
}

</mosaic_0001>

<llo_original>
// kernel: fcstl_forward.1
$region0: #{fcstl_forward.1}
  #allocation0 [shape = 'u32[]', space=smem, size = 0x4, offset = 0x4, fixed_abs, tag = 'smem constant byte address 0x4 - core index']
  #allocation1 [shape = 'u32[144,128]{1,0:T(1,128)}', space=vmem, size = 0x12000, scoped, tag = 'internal scratch']
  %s0 = inlined_call_operand.vmem [shape: f32[16,32], index: 0, kind: input, shape index: {}]
  %s1 = inlined_call_operand.vmem [shape: bf16[32,128], index: 1, kind: input, shape index: {}]
  %s2 = inlined_call_operand.vmem [shape: f32[1,128], index: 2, kind: input, shape index: {}]
  %s3 = inlined_call_operand.vmem [shape: f32[16,128], index: 3, kind: output, shape index: {}]
  %s4 = sld [smem:[#allocation0]]
  $region22: #{fcstl_forward.1} parent=0
    _
  %s6 = ssub.s32 1, %s4
  %s7 = scalar_select 0, %s6, %s4
  // Predicated region
  $region2: #{fcstl_forward.1} parent=0 // pred_check
    _
  $region3: #{fcstl_forward.1} parent=0 // pred_check_branch
    %9 = sbr.rel (0) target = $region5
  $region4: #{fcstl_forward.1} parent=0 // pred_region
    _
  $region5: #{fcstl_forward.1} parent=0 // pred_fallthru
    _
  // Predicated region
  $region6: #{fcstl_forward.1} parent=0 // pred_check
    _
  $region7: #{fcstl_forward.1} parent=0 // pred_check_branch
    %11 = sbr.rel (0) target = $region9
  $region8: #{fcstl_forward.1} parent=0 // pred_region
    _
  $region9: #{fcstl_forward.1} parent=0 // pred_fallthru
    _
  // Predicated region
  $region10: #{fcstl_forward.1} parent=0 // pred_check
    _
  $region11: #{fcstl_forward.1} parent=0 // pred_check_branch
    %13 = sbr.rel (0) target = $region13
  $region12: #{fcstl_forward.1} parent=0 // pred_region
    _
  $region13: #{fcstl_forward.1} parent=0 // pred_fallthru
    _
  %v15 = vld [vmem:[%s0] sm:$0xff]
  %v16 = vld [vmem:[%s0 + $0x8] sm:$0xff]
  %v17 = vpack.c.bf16 %v16, %v15
  %v18 = vld [vmem:[%s1] sm:$0xf]
  %v19 = vld [vmem:[%s1 + $0x4] sm:$0xf]
  %v20 = vld [vmem:[%s1 + $0x8] sm:$0xf]
  %v21 = vld [vmem:[%s1 + $0xc] sm:$0xf]
  %v22 = vld [vmem:[%s2] sm:$0x1]
  %v24 = vlaneseq
  %v25 = vshrl.u32 %v24, 7
  %v26 = vsub.s32 0, %v25
  %v27 = vrot.slane %v22, %v26
  %v33 = vunpack.c.l.b16 %v18
  %v34 = vunpack.c.l.b16 %v19
  %v35 = vunpack.c.l.b16 %v20
  %v36 = vunpack.c.l.b16 %v21
  %v37 = vpack.c.b16 %v34, %v33
  %v38 = vpack.c.b16 %v36, %v35
  %vm41 = vcmask 261120
  %v43 = vsel %vm41, %v17, 0
  %45 = vmatprep.subr.bf16.mxu0 0
  %46 = vmatpush1.bf16.msra.mxu0 %v37
  %47 = vmatprep.subr.bf16.mxu0 0
  %48 = vmatpush1.bf16.msra.mxu0 %v38
  %49 = vmatprep.subr.bf16.mxu0 0
  %50 = vmatpush1.bf16.msra.mxu0 0
  %51 = vmatprep.subr.bf16.mxu0 0
  %52 = vmatpush1.bf16.msra.mxu0 0
  %53 = vmatprep.subr.bf16.mxu0 0
  %54 = vmatpush1.bf16.msra.mxu0 0
  %55 = vmatprep.subr.bf16.mxu0 0
  %56 = vmatpush1.bf16.msra.mxu0 0
  %57 = vmatprep.subr.bf16.mxu0 0
  %58 = vmatpush1.bf16.msra.mxu0 0
  %59 = vmatprep.subr.bf16.mxu0 0
  %60 = vmatpush1.bf16.msra.mxu0 0
  %61 = vmatprep.subr.bf16.mxu0 0
  %62 = vmatpush1.bf16.msra.mxu0 0
  %63 = vmatprep.subr.bf16.mxu0 0
  %64 = vmatpush1.bf16.msra.mxu0 0
  %65 = vmatprep.subr.bf16.mxu0 0
  %66 = vmatpush1.bf16.msra.mxu0 0
  %67 = vmatprep.subr.bf16.mxu0 0
  %68 = vmatpush1.bf16.msra.mxu0 0
  %69 = vmatprep.subr.bf16.mxu0 0
  %70 = vmatpush1.bf16.msra.mxu0 0
  %71 = vmatprep.subr.bf16.mxu0 0
  %72 = vmatpush1.bf16.msra.mxu0 0
  %73 = vmatprep.subr.bf16.mxu0 0
  %74 = vmatpush1.bf16.msra.mxu0 0
  %75 = vmatprep.subr.bf16.mxu0 0
  %76 = vmatpush1.bf16.msra.mxu0 0
  %77 = vmatprep.mubr.bf16.mxu0 0
  %78 = vmatmul.mubr.bf16.gmra.mrb[0].mxu0 %v43
  %v79 = vpop.f32.mrb[0].mxu0
  %v80 = vadd.f32 %v27, %v79
  %v81 = vpop.f32.mrb[0].mxu0
  %v82 = vpop.f32.mrb[0].mxu0
  %v83 = vadd.f32 %v27, %v82
  %v84 = vpop.f32.mrb[0].mxu0
  %85 = vdwg.mxu0
  %v86 = vtanh.pop %v80
  %v87 = vtanh.pop %v83
  %88 = vst [vmem:[%s3] sm:$0xff] %v86
  %89 = vst [vmem:[%s3 + $0x8] sm:$0xff] %v87
  // Predicated region
  $region14: #{fcstl_forward.1} parent=0 // pred_check
    _
  $region15: #{fcstl_forward.1} parent=0 // pred_check_branch
    %91 = sbr.rel (0) target = $region17
  $region16: #{fcstl_forward.1} parent=0 // pred_region
    _
  $region17: #{fcstl_forward.1} parent=0 // pred_fallthru
    _
  // Predicated region
  $region18: #{fcstl_forward.1} parent=0 // pred_check
    _
  $region19: #{fcstl_forward.1} parent=0 // pred_check_branch
    %93 = sbr.rel (0) target = $region21
  $region20: #{fcstl_forward.1} parent=0 // pred_region
    _
  $region21: #{fcstl_forward.1} parent=0 // pred_fallthru
    _

</llo_original>
